<compile_context>
chip_gen: v5e
topology: v5e:2x2
jax: 0.10.0
libtpu: 0.0.40
codegen_flags: <defaults>
</compile_context>

<pallas_src>
import jax
import jax.numpy as jnp
from jax.experimental import pallas as pl
from jax.experimental.pallas import tpu as pltpu

LANE = 128
SUBLANE_BF16 = 16  # bf16 packs 16 rows per vreg sublane group


def _round_up(n, m):
    return ((n + m - 1) // m) * m


# ----------------------------------------------------------------------------
# Kernel
# ----------------------------------------------------------------------------
def decoder_kernel(x_ref, w1_ref, b1_ref, w2_ref, b2_ref, o_ref, h_ref):
    """One (batch tile i, output N tile j) step of the fused Decoder forward."""
    j = pl.program_id(1)

    # MLP block depends only on the batch tile: compute it once per batch tile
    # (innermost N axis, j == 0) and cache the bf16 result in VMEM scratch.
    @pl.when(j == 0)
    def _():
        # Linear(n_input -> n_hidden): bf16 operands on the MXU, f32 accumulate.
        h = jnp.dot(x_ref[...], w1_ref[...],
                    preferred_element_type=jnp.float32) + b1_ref[...]

        # LayerNorm over last dim (eps=1e-5, biased variance, no affine), f32 VPU math.
        # Note: padded/garbage batch rows give var ~ 0 -> rsqrt(1e-5)*0 = 0 (no NaN)
        # and are masked out of the output store anyway.
        mean = jnp.mean(h, axis=-1, keepdims=True)
        centered = h - mean
        var = jnp.mean(centered * centered, axis=-1, keepdims=True)
        h = centered * jax.lax.rsqrt(var + 1e-5)

        # LeakyReLU (default negative_slope = 0.01).
        h = jnp.where(h > 0, h, 0.01 * h)

        # Dropout(p=0.1) is identity in eval mode.
        # TODO(synk): training-mode dropout (stateful PRNG mask) not implemented.
        h_ref[...] = h.astype(h_ref.dtype)

    # recon_decoder: Linear(n_hidden -> n_output), streamed over lane-dense N tiles.
    out = jnp.dot(h_ref[...], w2_ref[...],
                  preferred_element_type=jnp.float32) + b2_ref[...]
    o_ref[...] = out.astype(o_ref.dtype)


# ----------------------------------------------------------------------------
# One-time (model-load) weight preprocessing — NOT on the per-call path.
# ----------------------------------------------------------------------------
def prepare_decoder_params(w1, b1, w2, b2, *, max_n_tile=2048):
    """Cast weights to bf16, pad the output projection to a lane-dense multiple
    of the chosen N tile, and reshape biases to (1, n). Call once per model."""
    w1 = jnp.asarray(w1)
    w2 = jnp.asarray(w2)
    b1 = jnp.asarray(b1).reshape(1, -1).astype(jnp.float32)
    b2 = jnp.asarray(b2).reshape(1, -1).astype(jnp.float32)

    n_input, n_hidden = w1.shape
    n_output = w2.shape[1]

    # N tile: multiple of 128 lanes (unmasked, lane-dense stores), capped so the
    # double-buffered out tile + w2 tile fit comfortably in v7x's 64 MiB VMEM.
    tn = min(_round_up(n_output, LANE), _round_up(max_n_tile, LANE))
    n_out_pad = _round_up(n_output, tn)
    if n_out_pad != n_output:
        w2 = jnp.pad(w2, ((0, 0), (0, n_out_pad - n_output)))
        b2 = jnp.pad(b2, ((0, 0), (0, n_out_pad - n_output)))

    return dict(
        w1=w1.astype(jnp.bfloat16), b1=b1,
        w2=w2.astype(jnp.bfloat16), b2=b2,
        n_input=n_input, n_hidden=n_hidden,
        n_output=n_output, n_out_pad=n_out_pad, tn=tn,
    )


def _pick_batch_tile(B, *, max_tile=512, target_steps=8):
    """Batch tile: multiple of 16 (bf16 sublane packing), sized so the grid has
    ~4-8 steps (even -> both v7x cores get >=2 steps), collapsed for tiny B."""
    if B <= 2 * SUBLANE_BF16:
        return _round_up(B, SUBLANE_BF16)
    tb = _round_up(pl.cdiv(B, target_steps), SUBLANE_BF16)
    tb = max(min(tb, max_tile), 128)            # keep MXU-friendly row tiles
    return min(tb, _round_up(B, SUBLANE_BF16))  # never exceed (padded) B


# ----------------------------------------------------------------------------
# Forward wrapper
# ----------------------------------------------------------------------------
def decoder_forward(x, params, *, out_dtype=jnp.float32):
    """Decoder(loss='mse') forward. x: (B, n_input) float array.

    `params` comes from prepare_decoder_params (pre-cast / pre-padded weights)."""
    B, n_input = x.shape
    assert n_input == params["n_input"]
    n_hidden = params["n_hidden"]
    n_out_pad = params["n_out_pad"]
    tn = params["tn"]

    # bf16 at the HBM boundary (the MXU operand dtype); LN/LeakyReLU stay f32 in-kernel.
    x = x.astype(jnp.bfloat16)

    tb = _pick_batch_tile(B)
    nb = pl.cdiv(B, tb)     # partial last batch tile handled by Pallas masking (no jnp.pad)
    nn = n_out_pad // tn
    grid = (nb, nn)

    w1, b1, w2, b2 = params["w1"], params["b1"], params["w2"], params["b2"]

    cost = pl.CostEstimate(
        flops=2 * B * n_hidden * (n_input + n_out_pad),
        transcendentals=B,  # one rsqrt per row (LayerNorm)
        bytes_accessed=(x.size * x.dtype.itemsize
                        + w1.size * 2 + w2.size * 2 + b1.size * 4 + b2.size * 4
                        + B * n_out_pad * jnp.dtype(out_dtype).itemsize),
    )

    out = pl.pallas_call(
        decoder_kernel,
        out_shape=jax.ShapeDtypeStruct((B, n_out_pad), out_dtype),
        grid=grid,
        in_specs=[
            pl.BlockSpec((tb, n_input), lambda i, j: (i, 0)),        # streamed x tile
            pl.BlockSpec((n_input, n_hidden), lambda i, j: (0, 0)),  # resident w1
            pl.BlockSpec((1, n_hidden), lambda i, j: (0, 0)),        # resident b1
            pl.BlockSpec((n_hidden, tn), lambda i, j: (0, j)),       # streamed w2 N tile
            pl.BlockSpec((1, tn), lambda i, j: (0, j)),              # streamed b2 N tile
        ],
        out_specs=pl.BlockSpec((tb, tn), lambda i, j: (i, j)),
        scratch_shapes=[pltpu.VMEM((tb, n_hidden), jnp.bfloat16)],   # cached MLP output
        compiler_params=pltpu.CompilerParams(
            dimension_semantics=("parallel", "arbitrary"),
            vmem_limit_bytes=48 * 1024 * 1024,
        ),
        cost_estimate=cost,
    )(x, w1, b1, w2, b2)

    return out[:, :params["n_output"]]


# ----------------------------------------------------------------------------
# References
# ----------------------------------------------------------------------------
def reference_forward_matched(x, w1, b1, w2, b2):
    """Same bf16-operand / f32-accumulate math as the kernel (pure JAX)."""
    h = jnp.dot(x.astype(jnp.bfloat16), w1.astype(jnp.bfloat16),
                preferred_element_type=jnp.float32) + b1.reshape(1, -1)
    mean = jnp.mean(h, axis=-1, keepdims=True)
    var = jnp.mean((h - mean) ** 2, axis=-1, keepdims=True)
    h = (h - mean) * jax.lax.rsqrt(var + 1e-5)
    h = jnp.where(h > 0, h, 0.01 * h)
    return jnp.dot(h.astype(jnp.bfloat16), w2.astype(jnp.bfloat16),
                   preferred_element_type=jnp.float32) + b2.reshape(1, -1)


def reference_forward_f32(x, w1, b1, w2, b2):
    """Full-f32 PyTorch-equivalent reference (looser comparison)."""
    h = x @ w1 + b1.reshape(1, -1)
    mean = jnp.mean(h, axis=-1, keepdims=True)
    var = jnp.mean((h - mean) ** 2, axis=-1, keepdims=True)
    h = (h - mean) / jnp.sqrt(var + 1e-5)
    h = jnp.where(h > 0, h, 0.01 * h)
    return h @ w2 + b2.reshape(1, -1)


if __name__ == "__main__":
    # Module-default sizes; batch chosen so the batch grid has 4 steps
    # (tb = 128 -> grid = (4, 1)), even for v7x's 2 TensorCores.
    B = 512
    n_input = 32
    n_hidden = 128
    n_output = 64

    key = jax.random.PRNGKey(0)
    kx, k1, kb1, k2, kb2 = jax.random.split(key, 5)

    x = jax.random.normal(kx, (B, n_input), dtype=jnp.float32)

    # Deterministic synthetic parameters (PyTorch-style fan-in scaling), stored
    # pre-transposed as (in_features, out_features); biases are 1-D as in PyTorch.
    bound1 = 1.0 / jnp.sqrt(n_input)
    w1 = jax.random.uniform(k1, (n_input, n_hidden), jnp.float32, -bound1, bound1)
    b1 = jax.random.uniform(kb1, (n_hidden,), jnp.float32, -bound1, bound1)

    bound2 = 1.0 / jnp.sqrt(n_hidden)
    w2 = jax.random.uniform(k2, (n_hidden, n_output), jnp.float32, -bound2, bound2)
    b2 = jax.random.uniform(kb2, (n_output,), jnp.float32, -bound2, bound2)

    # One-time (model-load) weight preprocessing — off the per-call path.
    params = prepare_decoder_params(w1, b1, w2, b2)

    out = decoder_forward(x, params)
    out = jax.block_until_ready(out)
    assert out.shape == (B, n_output)

    # Tight check against a reference using the same bf16 matmul operands.
    ref_m = reference_forward_matched(x, w1, b1, w2, b2)
    assert jnp.allclose(out, ref_m, atol=2e-3, rtol=2e-3), "mismatch vs matched reference"

    # Loose semantic check against the full-f32 PyTorch-equivalent reference.
    # NOTE: bf16 MXU operands deviate from PyTorch f32 Linear; documented tolerance.
    ref_f = reference_forward_f32(x, w1, b1, w2, b2)
    assert jnp.allclose(out, ref_f, atol=5e-2, rtol=5e-2), "mismatch vs f32 reference"

    print("KERNEL_OK")
</pallas_src>

<mosaic_0001>
module attributes {stable_mosaic.version = 11 : i64} {
  func.func @decoder_kernel(%arg0: i32, %arg1: i32, %arg2: memref<128x32xbf16, #tpu.memory_space<vmem>>, %arg3: memref<32x128xbf16, #tpu.memory_space<vmem>>, %arg4: memref<1x128xf32, #tpu.memory_space<vmem>>, %arg5: memref<128x128xbf16, #tpu.memory_space<vmem>>, %arg6: memref<1x128xf32, #tpu.memory_space<vmem>>, %arg7: memref<128x128xf32, #tpu.memory_space<vmem>>, %arg8: memref<128x128xbf16, #tpu.memory_space<vmem>>) attributes {dimension_semantics = [#tpu.dimension_semantics<parallel>, #tpu.dimension_semantics<arbitrary>], iteration_bounds = array<i64: 4, 1>, scalar_prefetch = 0 : i64, scratch_operands = 1 : i64, tpu.core_type = #tpu.core_type<tc>, window_params = [{transform_indices = @transform_0, window_bounds = array<i64: 128, 32>}, {pipeline_mode = #tpu.pipeline_mode<synchronous>, transform_indices = @transform_1, window_bounds = array<i64: 32, 128>}, {pipeline_mode = #tpu.pipeline_mode<synchronous>, transform_indices = @transform_2, window_bounds = array<i64: 1, 128>}, {transform_indices = @transform_3, window_bounds = array<i64: 128, 128>}, {transform_indices = @transform_4, window_bounds = array<i64: 1, 128>}, {transform_indices = @transform_5, window_bounds = array<i64: 128, 128>}]} {
    %c0_i32 = arith.constant 0 : i32
    %0 = arith.cmpi eq, %arg1, %c0_i32 : i32
    %1 = arith.extui %0 : i1 to i32
    %c0_i32_0 = arith.constant 0 : i32
    %2 = arith.cmpi ne, %1, %c0_i32_0 : i32
    scf.if %2 {
      %c0_8 = arith.constant 0 : index
      %c0_9 = arith.constant 0 : index
      %10 = vector.load %arg2[%c0_8, %c0_9] : memref<128x32xbf16, #tpu.memory_space<vmem>>, vector<128x32xbf16>
      %c0_10 = arith.constant 0 : index
      %c0_11 = arith.constant 0 : index
      %11 = vector.load %arg3[%c0_10, %c0_11] : memref<32x128xbf16, #tpu.memory_space<vmem>>, vector<32x128xbf16>
      %cst_12 = arith.constant dense<0.000000e+00> : vector<128x128xf32>
      %12 = tpu.matmul %10, %11, %cst_12 {dimension_numbers = #tpu.dot_dimension_numbers<[1], [0], [0], [1], [0, 0, 1, 1], [], []>} : vector<128x32xbf16>, vector<32x128xbf16>, vector<128x128xf32> -> vector<128x128xf32>
      %c0_13 = arith.constant 0 : index
      %c0_14 = arith.constant 0 : index
      %13 = vector.load %arg4[%c0_13, %c0_14] : memref<1x128xf32, #tpu.memory_space<vmem>>, vector<1x128xf32>
      %14 = vector.broadcast %13 : vector<1x128xf32> to vector<128x128xf32>
      %15 = arith.addf %12, %14 : vector<128x128xf32>
      %cst_15 = arith.constant dense<0.000000e+00> : vector<128xf32>
      %16 = vector.multi_reduction <add>, %15, %cst_15 [1] : vector<128x128xf32> to vector<128xf32>
      %17 = vector.shape_cast %16 : vector<128xf32> to vector<128x1xf32>
      %cst_16 = arith.constant 1.280000e+02 : f32
      %18 = vector.broadcast %cst_16 : f32 to vector<128x1xf32>
      %19 = arith.divf %17, %18 : vector<128x1xf32>
      %20 = vector.broadcast %19 : vector<128x1xf32> to vector<128x128xf32>
      %21 = arith.subf %15, %20 : vector<128x128xf32>
      %22 = arith.mulf %21, %21 : vector<128x128xf32>
      %cst_17 = arith.constant dense<0.000000e+00> : vector<128xf32>
      %23 = vector.multi_reduction <add>, %22, %cst_17 [1] : vector<128x128xf32> to vector<128xf32>
      %24 = vector.shape_cast %23 : vector<128xf32> to vector<128x1xf32>
      %cst_18 = arith.constant 1.280000e+02 : f32
      %25 = vector.broadcast %cst_18 : f32 to vector<128x1xf32>
      %26 = arith.divf %24, %25 : vector<128x1xf32>
      %cst_19 = arith.constant 9.99999974E-6 : f32
      %27 = vector.broadcast %cst_19 : f32 to vector<128x1xf32>
      %28 = arith.addf %26, %27 : vector<128x1xf32>
      %29 = math.rsqrt %28 : vector<128x1xf32>
      %30 = vector.broadcast %29 : vector<128x1xf32> to vector<128x128xf32>
      %31 = arith.mulf %21, %30 : vector<128x128xf32>
      %cst_20 = arith.constant 0.000000e+00 : f32
      %32 = vector.broadcast %cst_20 : f32 to vector<128x128xf32>
      %33 = arith.cmpf ogt, %31, %32 : vector<128x128xf32>
      %cst_21 = arith.constant 0.00999999977 : f32
      %34 = vector.broadcast %cst_21 : f32 to vector<128x128xf32>
      %35 = arith.mulf %34, %31 : vector<128x128xf32>
      %36 = arith.select %33, %31, %35 : vector<128x128xi1>, vector<128x128xf32>
      %37 = arith.truncf %36 : vector<128x128xf32> to vector<128x128xbf16>
      %c0_22 = arith.constant 0 : index
      %c0_23 = arith.constant 0 : index
      %38 = vector.load %arg8[%c0_22, %c0_23] : memref<128x128xbf16, #tpu.memory_space<vmem>>, vector<128x128xbf16>
      tpu.vector_store %arg8[%c0_22, %c0_23], %37 {strides = array<i32>} : memref<128x128xbf16, #tpu.memory_space<vmem>>, vector<128x128xbf16>,
    } else {
    }
    %c0 = arith.constant 0 : index
    %c0_1 = arith.constant 0 : index
    %3 = vector.load %arg8[%c0, %c0_1] : memref<128x128xbf16, #tpu.memory_space<vmem>>, vector<128x128xbf16>
    %c0_2 = arith.constant 0 : index
    %c0_3 = arith.constant 0 : index
    %4 = vector.load %arg5[%c0_2, %c0_3] : memref<128x128xbf16, #tpu.memory_space<vmem>>, vector<128x128xbf16>
    %cst = arith.constant dense<0.000000e+00> : vector<128x128xf32>
    %5 = tpu.matmul %3, %4, %cst {dimension_numbers = #tpu.dot_dimension_numbers<[1], [0], [0], [1], [0, 0, 1, 1], [], []>} : vector<128x128xbf16>, vector<128x128xbf16>, vector<128x128xf32> -> vector<128x128xf32>
    %c0_4 = arith.constant 0 : index
    %c0_5 = arith.constant 0 : index
    %6 = vector.load %arg6[%c0_4, %c0_5] : memref<1x128xf32, #tpu.memory_space<vmem>>, vector<1x128xf32>
    %7 = vector.broadcast %6 : vector<1x128xf32> to vector<128x128xf32>
    %8 = arith.addf %5, %7 : vector<128x128xf32>
    %c0_6 = arith.constant 0 : index
    %c0_7 = arith.constant 0 : index
    %9 = vector.load %arg7[%c0_6, %c0_7] : memref<128x128xf32, #tpu.memory_space<vmem>>, vector<128x128xf32>
    tpu.vector_store %arg7[%c0_6, %c0_7], %8 {strides = array<i32>} : memref<128x128xf32, #tpu.memory_space<vmem>>, vector<128x128xf32>,
    return
  }
  func.func @transform_0(%arg0: i32, %arg1: i32) -> (i32, i32) {
    %c0_i32 = arith.constant 0 : i32
    %c0_i32_0 = arith.constant 0 : i32
    return %arg0, %c0_i32 : i32, i32
  }
  func.func @transform_1(%arg0: i32, %arg1: i32) -> (i32, i32) {
    %c0_i32 = arith.constant 0 : i32
    %c0_i32_0 = arith.constant 0 : i32
    %c0_i32_1 = arith.constant 0 : i32
    return %c0_i32, %c0_i32_0 : i32, i32
  }
  func.func @transform_2(%arg0: i32, %arg1: i32) -> (i32, i32) {
    %c0_i32 = arith.constant 0 : i32
    %c0_i32_0 = arith.constant 0 : i32
    %c0_i32_1 = arith.constant 0 : i32
    return %c0_i32, %c0_i32_0 : i32, i32
  }
  func.func @transform_3(%arg0: i32, %arg1: i32) -> (i32, i32) {
    %c0_i32 = arith.constant 0 : i32
    %c0_i32_0 = arith.constant 0 : i32
    return %c0_i32, %arg1 : i32, i32
  }
  func.func @transform_4(%arg0: i32, %arg1: i32) -> (i32, i32) {
    %c0_i32 = arith.constant 0 : i32
    %c0_i32_0 = arith.constant 0 : i32
    return %c0_i32, %arg1 : i32, i32
  }
  func.func @transform_5(%arg0: i32, %arg1: i32) -> (i32, i32) {
    %c0_i32 = arith.constant 0 : i32
    return %arg0, %arg1 : i32, i32
  }
}

</mosaic_0001>

<llo_original>
// kernel: tpu_custom_call.1
$region0: #{tpu_custom_call.1}
  #allocation0 [shape = 'u32[]', space=smem, size = 0x4, offset = 0x4, fixed_abs, tag = 'smem constant byte address 0x4 - core index']
  #allocation1 [shape = 'u32[72,128]{1,0:T(1,128)}', space=vmem, size = 0x9000, scoped, tag = 'internal scratch']
  #allocation2 [shape = 'bf16[128,128]{1,0:T(8,128)(2,1)}', space=vmem, size = 0x8000, scoped, tag = 'scratch operand']
  %s0 = inlined_call_operand.vmem [shape: bf16[512,32], index: 0, kind: input, shape index: {}]
  %s1 = inlined_call_operand.vmem [shape: bf16[32,128], index: 1, kind: input, shape index: {}]
  %s2 = inlined_call_operand.vmem [shape: f32[1,128], index: 2, kind: input, shape index: {}]
  %s3 = inlined_call_operand.vmem [shape: bf16[128,128], index: 3, kind: input, shape index: {}]
  %s4 = inlined_call_operand.vmem [shape: f32[1,128], index: 4, kind: input, shape index: {}]
  %s5 = inlined_call_operand.hbm [shape: f32[512,128], index: 5, kind: output, shape index: {}]
  %s6 = sld [smem:[#allocation0]]
  $region57: #{tpu_custom_call.1} parent=0
    _
  %s8 = ssub.s32 1, %s6
  %s9 = scalar_select 0, %s8, %s6
  $region1: #{tpu_custom_call.1} parent=0
    #allocation3 [shape = 'u8[131072]{0}', space=vmem, size = 0x20000, scoped, tag = 'output window, operand 0']
    #allocation4 [shape = 's32[2]{0}', space=sflag, size = 0x8, scoped, tag = 'scoped memory for tpu_custom_call.1']
    %10 = vsyncpa [#allocation4], 0
    %s11 = scalar_lea.sflag [#allocation4], 1
    %12 = vsyncpa %s11, 0
    loop: start=0, step=1, limit=6
    $region2: #{tpu_custom_call.1} parent=1 // loop_pre_header
      _
    $region3: #{tpu_custom_call.1} parent=1 // loop_header
      %s14 = sphi 0, %s18
      %p15 = scmp.ge.s32.totalorder %s14, 6
      %s21 = sphi 0, %s33
      %s22 = sphi 0, %s29
      %s23 = sphi 0, %s21
      %s24 = sphi 0, %s22
      %s25 = sphi 0, %s23
      %s26 = sphi 0, %s24
      %s36 = sphi 0, %s38
      %s39 = sphi 0, %s36
      %s40 = sphi 0, %s39
      %s56 = sphi 0, %s40
      %s60 = sphi 0, %s60
      %s62 = sphi 0, %s60
      %s63 = sphi 0, %s62
      %s77 = sphi 0, %s63
      %s81 = sphi 0, %s81
      %s83 = sphi 0, %s81
      %s84 = sphi 0, %s83
      %s98 = sphi 0, %s84
      %s104 = sphi 0, %s106
      %s107 = sphi 0, %s104
      %s108 = sphi 0, %s107
      %s124 = sphi 0, %s108
      %s130 = sphi 0, %s132
      %s133 = sphi 0, %s130
      %s134 = sphi 0, %s133
      %s150 = sphi 0, %s134
      %s158 = sphi 0, %s160
      %s161 = sphi 0, %s158
      %s162 = sphi 0, %s161
      %s178 = sphi 0, %s162
    $region4: #{tpu_custom_call.1} parent=1 // loop_header_branch
      %17 = sbr.rel (%p15) target = $region8
    $region5: #{tpu_custom_call.1} parent=1 // loop_body
      %s19 = ssub.s32 %s14, 1
      %s20 = ssub.s32 %s14, 2
      %s27 = sadd.s32 1, %s22
      %p28 = scmp.ge.s32.totalorder %s27, 1
      %s29 = scalar_select %p28, 0, %s27
      %s30 = sadd.s32 1, %s21
      %s31 = scalar_select %p28, %s30, %s21
      %p32 = scmp.ge.s32.totalorder %s31, 4
      %s33 = scalar_select %p32, 0, %s31
      %s34 = ssub.s32 %s21, %s33
      %p35 = scmp.eq.s32.totalorder %s34, 0
      %s37 = sadd.s32 %s36, 1
      %s38 = scalar_select %p35, %s36, %s37
      %p41 = pneg %p35
      %p42 = scmp.eq.s32.totalorder %s14, 3
      %p43 = por %p41, %p42
      %p44 = scmp.ne.s32.totalorder %s36, %s39
      %p45 = scmp.eq.s32.totalorder %s14, 0
      %p46 = por %p44, %p45
      %p47 = scmp.ne.s32.totalorder %s36, %s39
      %p48 = scmp.eq.s32.totalorder %s19, 3
      %p49 = por %p47, %p48
      %p50 = scmp.ne.s32.totalorder %s39, %s40
      %p51 = scmp.eq.s32.totalorder %s19, 0
      %p52 = por %p50, %p51
      %p53 = scmp.ne.s32.totalorder %s39, %s40
      %p54 = scmp.eq.s32.totalorder %s20, 3
      %p55 = por %p53, %p54
      %p57 = scmp.ne.s32.totalorder %s40, %s56
      %p58 = scmp.eq.s32.totalorder %s20, 0
      %p59 = por %p57, %p58
      %s61 = sadd.s32 %s60, 1
      %p64 = scmp.eq.s32.totalorder %s14, 3
      %p65 = scmp.ne.s32.totalorder %s60, %s62
      %p66 = scmp.eq.s32.totalorder %s14, 0
      %p67 = por %p65, %p66
      %p68 = scmp.ne.s32.totalorder %s60, %s62
      %p69 = scmp.eq.s32.totalorder %s19, 3
      %p70 = por %p68, %p69
      %p71 = scmp.ne.s32.totalorder %s62, %s63
      %p72 = scmp.eq.s32.totalorder %s19, 0
      %p73 = por %p71, %p72
      %p74 = scmp.ne.s32.totalorder %s62, %s63
      %p75 = scmp.eq.s32.totalorder %s20, 3
      %p76 = por %p74, %p75
      %p78 = scmp.ne.s32.totalorder %s63, %s77
      %p79 = scmp.eq.s32.totalorder %s20, 0
      %p80 = por %p78, %p79
      %s82 = sadd.s32 %s81, 1
      %p85 = scmp.eq.s32.totalorder %s14, 3
      %p86 = scmp.ne.s32.totalorder %s81, %s83
      %p87 = scmp.eq.s32.totalorder %s14, 0
      %p88 = por %p86, %p87
      %p89 = scmp.ne.s32.totalorder %s81, %s83
      %p90 = scmp.eq.s32.totalorder %s19, 3
      %p91 = por %p89, %p90
      %p92 = scmp.ne.s32.totalorder %s83, %s84
      %p93 = scmp.eq.s32.totalorder %s19, 0
      %p94 = por %p92, %p93
      %p95 = scmp.ne.s32.totalorder %s83, %s84
      %p96 = scmp.eq.s32.totalorder %s20, 3
      %p97 = por %p95, %p96
      %p99 = scmp.ne.s32.totalorder %s84, %s98
      %p100 = scmp.eq.s32.totalorder %s20, 0
      %p101 = por %p99, %p100
      %s102 = ssub.s32 %s22, %s29
      %p103 = scmp.eq.s32.totalorder %s102, 0
      %s105 = sadd.s32 %s104, 1
      %s106 = scalar_select %p103, %s104, %s105
      %p109 = pneg %p103
      %p110 = scmp.eq.s32.totalorder %s14, 3
      %p111 = por %p109, %p110
      %p112 = scmp.ne.s32.totalorder %s104, %s107
      %p113 = scmp.eq.s32.totalorder %s14, 0
      %p114 = por %p112, %p113
      %p115 = scmp.ne.s32.totalorder %s104, %s107
      %p116 = scmp.eq.s32.totalorder %s19, 3
      %p117 = por %p115, %p116
      %p118 = scmp.ne.s32.totalorder %s107, %s108
      %p119 = scmp.eq.s32.totalorder %s19, 0
      %p120 = por %p118, %p119
      %p121 = scmp.ne.s32.totalorder %s107, %s108
      %p122 = scmp.eq.s32.totalorder %s20, 3
      %p123 = por %p121, %p122
      %p125 = scmp.ne.s32.totalorder %s108, %s124
      %p126 = scmp.eq.s32.totalorder %s20, 0
      %p127 = por %p125, %p126
      %s128 = ssub.s32 %s22, %s29
      %p129 = scmp.eq.s32.totalorder %s128, 0
      %s131 = sadd.s32 %s130, 1
      %s132 = scalar_select %p129, %s130, %s131
      %p135 = pneg %p129
      %p136 = scmp.eq.s32.totalorder %s14, 3
      %p137 = por %p135, %p136
      %p138 = scmp.ne.s32.totalorder %s130, %s133
      %p139 = scmp.eq.s32.totalorder %s14, 0
      %p140 = por %p138, %p139
      %p141 = scmp.ne.s32.totalorder %s130, %s133
      %p142 = scmp.eq.s32.totalorder %s19, 3
      %p143 = por %p141, %p142
      %p144 = scmp.ne.s32.totalorder %s133, %s134
      %p145 = scmp.eq.s32.totalorder %s19, 0
      %p146 = por %p144, %p145
      %p147 = scmp.ne.s32.totalorder %s133, %s134
      %p148 = scmp.eq.s32.totalorder %s20, 3
      %p149 = por %p147, %p148
      %p151 = scmp.ne.s32.totalorder %s134, %s150
      %p152 = scmp.eq.s32.totalorder %s20, 0
      %p153 = por %p151, %p152
      %s154 = ssub.s32 %s21, %s33
      %s155 = ssub.s32 %s22, %s29
      %s156 = sor.u32 %s154, %s155
      %p157 = scmp.eq.s32.totalorder %s156, 0
      %s159 = sadd.s32 %s158, 1
      %s160 = scalar_select %p157, %s158, %s159
      %p163 = pneg %p157
      %p164 = scmp.eq.s32.totalorder %s14, 3
      %p165 = por %p163, %p164
      %p166 = scmp.ne.s32.totalorder %s158, %s161
      %p167 = scmp.eq.s32.totalorder %s14, 0
      %p168 = por %p166, %p167
      %p169 = scmp.ne.s32.totalorder %s158, %s161
      %p170 = scmp.eq.s32.totalorder %s19, 3
      %p171 = por %p169, %p170
      %p172 = scmp.ne.s32.totalorder %s161, %s162
      %p173 = scmp.eq.s32.totalorder %s19, 0
      %p174 = por %p172, %p173
      %p175 = scmp.ne.s32.totalorder %s161, %s162
      %p176 = scmp.eq.s32.totalorder %s20, 3
      %p177 = por %p175, %p176
      %p179 = scmp.ne.s32.totalorder %s162, %s178
      %p180 = scmp.eq.s32.totalorder %s20, 0
      %p181 = por %p179, %p180
      %p182 = scmp.le.s32.totalorder 1, %s14
      %p183 = scmp.lt.s32.totalorder %s14, 5
      %p184 = pnand %p182, %p183
      %p185 = pneg %p184
      // Predicated region
      $region9: #{tpu_custom_call.1} parent=5 // pred_check
        _
      $region10: #{tpu_custom_call.1} parent=5 // pred_check_branch
        %187 = sbr.rel (%p184) target = $region12
      $region11: #{tpu_custom_call.1} parent=5 // pred_region
        %s188 = ssub.s32 %s14, 1
        // Predicated region
        $region13: #{tpu_custom_call.1} parent=11 // pred_check
          %p189 = pneg %p73
        $region14: #{tpu_custom_call.1} parent=11 // pred_check_branch
          %191 = sbr.rel (%p189) target = $region16
        $region15: #{tpu_custom_call.1} parent=11 // pred_region
          _
        $region16: #{tpu_custom_call.1} parent=11 // pred_fallthru
          _
        // Predicated region
        $region17: #{tpu_custom_call.1} parent=11 // pred_check
          %p192 = pneg %p94
        $region18: #{tpu_custom_call.1} parent=11 // pred_check_branch
          %194 = sbr.rel (%p192) target = $region20
        $region19: #{tpu_custom_call.1} parent=11 // pred_region
          _
        $region20: #{tpu_custom_call.1} parent=11 // pred_fallthru
          _
        // Predicated region
        $region21: #{tpu_custom_call.1} parent=11 // pred_check
          %p195 = pneg %p120
        $region22: #{tpu_custom_call.1} parent=11 // pred_check_branch
          %197 = sbr.rel (%p195) target = $region24
        $region23: #{tpu_custom_call.1} parent=11 // pred_region
          %p198 = scmp.lt.s32.totalorder %s24, 0
          %s199 = scalar_select %p198, %s24, 0
          %s200 = smul.addr %s199, 4
          %s201 = scalar_lea.vmem %s3, %s200
        $region24: #{tpu_custom_call.1} parent=11 // pred_fallthru
          _
        // Predicated region
        $region25: #{tpu_custom_call.1} parent=11 // pred_check
          %p202 = pneg %p146
        $region26: #{tpu_custom_call.1} parent=11 // pred_check_branch
          %204 = sbr.rel (%p202) target = $region28
        $region27: #{tpu_custom_call.1} parent=11 // pred_region
          %p205 = scmp.lt.s32.totalorder %s24, 0
          %s206 = scalar_select %p205, %s24, 0
          %s207 = scalar_lea.vmem %s4, %s206
        $region28: #{tpu_custom_call.1} parent=11 // pred_fallthru
          _
      $region12: #{tpu_custom_call.1} parent=5 // pred_fallthru
        _
      %p208 = scmp.lt.s32.totalorder %s14, 4
      // Predicated region
      $region29: #{tpu_custom_call.1} parent=5 // pred_check
        %p209 = pneg %p208
      $region30: #{tpu_custom_call.1} parent=5 // pred_check_branch
        %211 = sbr.rel (%p209) target = $region32
      $region31: #{tpu_custom_call.1} parent=5 // pred_region
        // Predicated region
        $region33: #{tpu_custom_call.1} parent=31 // pred_check
          %p212 = pneg %p46
        $region34: #{tpu_custom_call.1} parent=31 // pred_check_branch
          %214 = sbr.rel (%p212) target = $region36
        $region35: #{tpu_custom_call.1} parent=31 // pred_region
          %s215 = smul.u32 16, %s21
          %p216 = scmp.lt.s32.totalorder %s215, 63
          %s217 = scalar_select %p216, %s215, 63
          %s218 = smul.addr %s217, 4
          %s219 = scalar_lea.vmem %s0, %s218
          %s220 = smul.u32 16, %s21
        $region36: #{tpu_custom_call.1} parent=31 // pred_fallthru
          _
      $region32: #{tpu_custom_call.1} parent=5 // pred_fallthru
        _
      %p221 = scmp.le.s32.totalorder 1, %s14
      %p222 = scmp.lt.s32.totalorder %s14, 5
      %p223 = pnand %p221, %p222
      %p224 = pneg %p223
      // Predicated region
      $region37: #{tpu_custom_call.1} parent=5 // pred_check
        _
      $region38: #{tpu_custom_call.1} parent=5 // pred_check_branch
        %226 = sbr.rel (%p223) target = $region40
      $region39: #{tpu_custom_call.1} parent=5 // pred_region
        %s227 = ssub.s32 %s14, 1
        %s228 = smul.u32 16, %s23
        %p229 = scmp.lt.s32.totalorder %s228, 63
        %s230 = scalar_select %p229, %s228, 63
        %s231 = smul.addr %s230, 4
        %s232 = scalar_lea.vmem %s0, %s231
        %p233 = pneg %p52
        %p234 = pneg %p49
        %p235 = pneg %p73
        %p236 = pneg %p70
        %p237 = pneg %p94
        %p238 = pneg %p91
        %p239 = scmp.lt.s32.totalorder %s24, 0
        %s240 = scalar_select %p239, %s24, 0
        %s241 = smul.addr %s240, 4
        %s242 = scalar_lea.vmem %s3, %s241
        %p243 = pneg %p120
        %p244 = pneg %p117
        %p245 = scmp.lt.s32.totalorder %s24, 0
        %s246 = scalar_select %p245, %s24, 0
        %s247 = scalar_lea.vmem %s4, %s246
        %p248 = pneg %p146
        %p249 = pneg %p143
        %p250 = pneg %p174
        %p251 = pneg %p171
        %s252 = sand.u32 %s161, 1
        %s253 = scalar_lea.sflag [#allocation4], %s252
        %s254 = sand.u32 %s161, 1
        %s255 = smul.addr %s254, 128
        %s256 = scalar_lea.vmem [#allocation3], %s255
        %s257 = smul.u32 16, %s23
        %p258 = scmp.lt.s32.totalorder %s257, 63
        %s259 = scalar_select %p258, %s257, 63
        %s260 = smul.addr %s259, 4
        %s261 = scalar_lea.vmem %s0, %s260
        %s262 = smul.u32 16, %s23
        %p263 = scmp.lt.s32.totalorder %s24, 0
        %s264 = scalar_select %p263, %s24, 0
        %s265 = smul.addr %s264, 4
        %s266 = scalar_lea.vmem %s3, %s265
        %p267 = scmp.lt.s32.totalorder %s24, 0
        %s268 = scalar_select %p267, %s24, 0
        %s269 = scalar_lea.vmem %s4, %s268
        %s270 = smul.u32 16, %s23
        %p272 = scmp.eq.s32.totalorder %s24, 0
        // Predicated region
        $region41: #{tpu_custom_call.1} parent=39 // pred_check
          %p273 = pneg %p272
        $region42: #{tpu_custom_call.1} parent=39 // pred_check_branch
          %275 = sbr.rel (%p273) target = $region44
        $region43: #{tpu_custom_call.1} parent=39 // pred_region
          %v276 = vld [vmem:[%s261] sm:$0xf]
          %v277 = vld [vmem:[%s261 + $0x4] sm:$0xf]
          %v278 = vld [vmem:[%s261 + $0x8] sm:$0xf]
          %v279 = vld [vmem:[%s261 + $0xc] sm:$0xf]
          %v280 = vld [vmem:[%s261 + $0x10] sm:$0xf]
          %v281 = vld [vmem:[%s261 + $0x14] sm:$0xf]
          %v282 = vld [vmem:[%s261 + $0x18] sm:$0xf]
          %v283 = vld [vmem:[%s261 + $0x1c] sm:$0xf]
          %v284 = vld [vmem:[%s261 + $0x20] sm:$0xf]
          %v285 = vld [vmem:[%s261 + $0x24] sm:$0xf]
          %v286 = vld [vmem:[%s261 + $0x28] sm:$0xf]
          %v287 = vld [vmem:[%s261 + $0x2c] sm:$0xf]
          %v288 = vld [vmem:[%s261 + $0x30] sm:$0xf]
          %v289 = vld [vmem:[%s261 + $0x34] sm:$0xf]
          %v290 = vld [vmem:[%s261 + $0x38] sm:$0xf]
          %v291 = vld [vmem:[%s261 + $0x3c] sm:$0xf]
          %v292 = vld [vmem:[%s1] sm:$0xf]
          %v293 = vld [vmem:[%s1 + $0x4] sm:$0xf]
          %v294 = vld [vmem:[%s1 + $0x8] sm:$0xf]
          %v295 = vld [vmem:[%s1 + $0xc] sm:$0xf]
          %v296 = vld [vmem:[%s2] sm:$0x1]
          %v298 = vperm.slane %v296, 0
          %v316 = vunpack.c.l.b16 %v276
          %v317 = vunpack.c.l.b16 %v277
          %v318 = vunpack.c.l.b16 %v278
          %v319 = vunpack.c.l.b16 %v279
          %v320 = vunpack.c.l.b16 %v280
          %v321 = vunpack.c.l.b16 %v281
          %v322 = vunpack.c.l.b16 %v282
          %v323 = vunpack.c.l.b16 %v283
          %v324 = vunpack.c.l.b16 %v284
          %v325 = vunpack.c.l.b16 %v285
          %v326 = vunpack.c.l.b16 %v286
          %v327 = vunpack.c.l.b16 %v287
          %v328 = vunpack.c.l.b16 %v288
          %v329 = vunpack.c.l.b16 %v289
          %v330 = vunpack.c.l.b16 %v290
          %v331 = vunpack.c.l.b16 %v291
          %v332 = vpack.c.b16 %v317, %v316
          %v333 = vpack.c.b16 %v319, %v318
          %v334 = vpack.c.b16 %v321, %v320
          %v335 = vpack.c.b16 %v323, %v322
          %v336 = vpack.c.b16 %v325, %v324
          %v337 = vpack.c.b16 %v327, %v326
          %v338 = vpack.c.b16 %v329, %v328
          %v339 = vpack.c.b16 %v331, %v330
          %v344 = vunpack.c.l.b16 %v292
          %v345 = vunpack.c.l.b16 %v293
          %v346 = vunpack.c.l.b16 %v294
          %v347 = vunpack.c.l.b16 %v295
          %v348 = vpack.c.b16 %v345, %v344
          %v349 = vpack.c.b16 %v347, %v346
          %vm352 = vcmask 261120
          %v354 = vsel %vm352, %v332, 0
          %v357 = vsel %vm352, %v333, 0
          %v360 = vsel %vm352, %v334, 0
          %v363 = vsel %vm352, %v335, 0
          %v366 = vsel %vm352, %v336, 0
          %v369 = vsel %vm352, %v337, 0
          %v372 = vsel %vm352, %v338, 0
          %v375 = vsel %vm352, %v339, 0
          %377 = vmatpush.bf16.msra.mxu0 0
          %378 = vmatpush.bf16.msra.mxu0 0
          %379 = vmatpush.bf16.msra.mxu0 0
          %380 = vmatpush.bf16.msra.mxu0 0
          %381 = vmatpush.bf16.msra.mxu0 0
          %382 = vmatpush.bf16.msra.mxu0 0
          %383 = vmatpush.bf16.msra.mxu0 %v349
          %384 = vmatpush.bf16.msra.mxu0 %v348
          %385 = vmatmul.bf16.gmra.mxu0 %v354
          %v386 = vpop.f32.mrf.mxu0
          %v387 = vadd.f32 %v298, %v386
          %v388 = vpop.f32.mrf.mxu0
          %v389 = vadd.f32 %v298, %v388
          %390 = vmatmul.bf16.gmra.mxu0 %v357
          %v391 = vpop.f32.mrf.mxu0
          %v392 = vadd.f32 %v298, %v391
          %v393 = vpop.f32.mrf.mxu0
          %v394 = vadd.f32 %v298, %v393
          %395 = vmatmul.bf16.gmra.mxu0 %v360
          %v396 = vpop.f32.mrf.mxu0
          %v397 = vadd.f32 %v298, %v396
          %v398 = vpop.f32.mrf.mxu0
          %v399 = vadd.f32 %v298, %v398
          %400 = vmatmul.bf16.gmra.mxu0 %v363
          %v401 = vpop.f32.mrf.mxu0
          %v402 = vadd.f32 %v298, %v401
          %v403 = vpop.f32.mrf.mxu0
          %v404 = vadd.f32 %v298, %v403
          %405 = vmatmul.bf16.gmra.mxu0 %v366
          %v406 = vpop.f32.mrf.mxu0
          %v407 = vadd.f32 %v298, %v406
          %v408 = vpop.f32.mrf.mxu0
          %v409 = vadd.f32 %v298, %v408
          %410 = vmatmul.bf16.gmra.mxu0 %v369
          %v411 = vpop.f32.mrf.mxu0
          %v412 = vadd.f32 %v298, %v411
          %v413 = vpop.f32.mrf.mxu0
          %v414 = vadd.f32 %v298, %v413
          %415 = vmatmul.bf16.gmra.mxu0 %v372
          %v416 = vpop.f32.mrf.mxu0
          %v417 = vadd.f32 %v298, %v416
          %v418 = vpop.f32.mrf.mxu0
          %v419 = vadd.f32 %v298, %v418
          %420 = vmatmul.bf16.gmra.mxu0 %v375
          %v421 = vpop.f32.mrf.mxu0
          %v422 = vadd.f32 %v298, %v421
          %v423 = vpop.f32.mrf.mxu0
          %v424 = vadd.f32 %v298, %v423
          %425 = vdwg.mxu0
          %426 = vadd.xlane.f32.xlu0 %v387
          %v427 = vpop.xlane.xlu0 %426
          %428 = vadd.xlane.f32.xlu0 %v389
          %v429 = vpop.xlane.xlu0 %428
          %430 = vadd.xlane.f32.xlu0 %v392
          %v431 = vpop.xlane.xlu0 %430
          %432 = vadd.xlane.f32.xlu0 %v394
          %v433 = vpop.xlane.xlu0 %432
          %434 = vadd.xlane.f32.xlu0 %v397
          %v435 = vpop.xlane.xlu0 %434
          %436 = vadd.xlane.f32.xlu0 %v399
          %v437 = vpop.xlane.xlu0 %436
          %438 = vadd.xlane.f32.xlu0 %v402
          %v439 = vpop.xlane.xlu0 %438
          %440 = vadd.xlane.f32.xlu0 %v404
          %v441 = vpop.xlane.xlu0 %440
          %442 = vadd.xlane.f32.xlu0 %v407
          %v443 = vpop.xlane.xlu0 %442
          %444 = vadd.xlane.f32.xlu0 %v409
          %v445 = vpop.xlane.xlu0 %444
          %446 = vadd.xlane.f32.xlu0 %v412
          %v447 = vpop.xlane.xlu0 %446
          %448 = vadd.xlane.f32.xlu0 %v414
          %v449 = vpop.xlane.xlu0 %448
          %450 = vadd.xlane.f32.xlu0 %v417
          %v451 = vpop.xlane.xlu0 %450
          %452 = vadd.xlane.f32.xlu0 %v419
          %v453 = vpop.xlane.xlu0 %452
          %454 = vadd.xlane.f32.xlu0 %v422
          %v455 = vpop.xlane.xlu0 %454
          %456 = vadd.xlane.f32.xlu0 %v424
          %v457 = vpop.xlane.xlu0 %456
          %v458 = vrcp.pop 128.0
          %v459 = vmul.f32 128.0, %v458
          %v460 = vsub.f32 1.0, %v459
          %v461 = vmul.f32 %v458, %v460
          %v462 = vadd.f32 %v458, %v461
          %vm463 = vweird.f32 %v458
          %v464 = vsel %vm463, %v458, %v462
          %v465 = vmul.f32 %v427, %v464
          %v466 = vmul.f32 %v429, %v464
          %v467 = vmul.f32 %v431, %v464
          %v468 = vmul.f32 %v433, %v464
          %v469 = vmul.f32 %v435, %v464
          %v470 = vmul.f32 %v437, %v464
          %v471 = vmul.f32 %v439, %v464
          %v472 = vmul.f32 %v441, %v464
          %v473 = vmul.f32 %v443, %v464
          %v474 = vmul.f32 %v445, %v464
          %v475 = vmul.f32 %v447, %v464
          %v476 = vmul.f32 %v449, %v464
          %v477 = vmul.f32 %v451, %v464
          %v478 = vmul.f32 %v453, %v464
          %v479 = vmul.f32 %v455, %v464
          %v480 = vmul.f32 %v457, %v464
          %v481 = vsub.f32 %v387, %v465
          %v482 = vsub.f32 %v389, %v466
          %v483 = vsub.f32 %v392, %v467
          %v484 = vsub.f32 %v394, %v468
          %v485 = vsub.f32 %v397, %v469
          %v486 = vsub.f32 %v399, %v470
          %v487 = vsub.f32 %v402, %v471
          %v488 = vsub.f32 %v404, %v472
          %v489 = vsub.f32 %v407, %v473
          %v490 = vsub.f32 %v409, %v474
          %v491 = vsub.f32 %v412, %v475
          %v492 = vsub.f32 %v414, %v476
          %v493 = vsub.f32 %v417, %v477
          %v494 = vsub.f32 %v419, %v478
          %v495 = vsub.f32 %v422, %v479
          %v496 = vsub.f32 %v424, %v480
          %v497 = vmul.f32 %v481, %v481
          %v498 = vmul.f32 %v482, %v482
          %v499 = vmul.f32 %v483, %v483
          %v500 = vmul.f32 %v484, %v484
          %v501 = vmul.f32 %v485, %v485
          %v502 = vmul.f32 %v486, %v486
          %v503 = vmul.f32 %v487, %v487
          %v504 = vmul.f32 %v488, %v488
          %v505 = vmul.f32 %v489, %v489
          %v506 = vmul.f32 %v490, %v490
          %v507 = vmul.f32 %v491, %v491
          %v508 = vmul.f32 %v492, %v492
          %v509 = vmul.f32 %v493, %v493
          %v510 = vmul.f32 %v494, %v494
          %v511 = vmul.f32 %v495, %v495
          %v512 = vmul.f32 %v496, %v496
          %513 = vadd.xlane.f32.xlu0 %v497
          %v514 = vpop.xlane.xlu0 %513
          %515 = vadd.xlane.f32.xlu0 %v498
          %v516 = vpop.xlane.xlu0 %515
          %517 = vadd.xlane.f32.xlu0 %v499
          %v518 = vpop.xlane.xlu0 %517
          %519 = vadd.xlane.f32.xlu0 %v500
          %v520 = vpop.xlane.xlu0 %519
          %521 = vadd.xlane.f32.xlu0 %v501
          %v522 = vpop.xlane.xlu0 %521
          %523 = vadd.xlane.f32.xlu0 %v502
          %v524 = vpop.xlane.xlu0 %523
          %525 = vadd.xlane.f32.xlu0 %v503
          %v526 = vpop.xlane.xlu0 %525
          %527 = vadd.xlane.f32.xlu0 %v504
          %v528 = vpop.xlane.xlu0 %527
          %529 = vadd.xlane.f32.xlu0 %v505
          %v530 = vpop.xlane.xlu0 %529
          %531 = vadd.xlane.f32.xlu0 %v506
          %v532 = vpop.xlane.xlu0 %531
          %533 = vadd.xlane.f32.xlu0 %v507
          %v534 = vpop.xlane.xlu0 %533
          %535 = vadd.xlane.f32.xlu0 %v508
          %v536 = vpop.xlane.xlu0 %535
          %537 = vadd.xlane.f32.xlu0 %v509
          %v538 = vpop.xlane.xlu0 %537
          %539 = vadd.xlane.f32.xlu0 %v510
          %v540 = vpop.xlane.xlu0 %539
          %541 = vadd.xlane.f32.xlu0 %v511
          %v542 = vpop.xlane.xlu0 %541
          %543 = vadd.xlane.f32.xlu0 %v512
          %v544 = vpop.xlane.xlu0 %543
          %v545 = vmul.f32 %v514, %v464
          %v546 = vmul.f32 %v516, %v464
          %v547 = vmul.f32 %v518, %v464
          %v548 = vmul.f32 %v520, %v464
          %v549 = vmul.f32 %v522, %v464
          %v550 = vmul.f32 %v524, %v464
          %v551 = vmul.f32 %v526, %v464
          %v552 = vmul.f32 %v528, %v464
          %v553 = vmul.f32 %v530, %v464
          %v554 = vmul.f32 %v532, %v464
          %v555 = vmul.f32 %v534, %v464
          %v556 = vmul.f32 %v536, %v464
          %v557 = vmul.f32 %v538, %v464
          %v558 = vmul.f32 %v540, %v464
          %v559 = vmul.f32 %v542, %v464
          %v560 = vmul.f32 %v544, %v464
          %v561 = vadd.f32 %v545, 1e-05
          %v562 = vadd.f32 %v546, 1e-05
          %v563 = vadd.f32 %v547, 1e-05
          %v564 = vadd.f32 %v548, 1e-05
          %v565 = vadd.f32 %v549, 1e-05
          %v566 = vadd.f32 %v550, 1e-05
          %v567 = vadd.f32 %v551, 1e-05
          %v568 = vadd.f32 %v552, 1e-05
          %v569 = vadd.f32 %v553, 1e-05
          %v570 = vadd.f32 %v554, 1e-05
          %v571 = vadd.f32 %v555, 1e-05
          %v572 = vadd.f32 %v556, 1e-05
          %v573 = vadd.f32 %v557, 1e-05
          %v574 = vadd.f32 %v558, 1e-05
          %v575 = vadd.f32 %v559, 1e-05
          %v576 = vadd.f32 %v560, 1e-05
          %v577 = vrsqrt.pop %v561
          %v578 = vmul.f32 %v577, %v561
          %v579 = vmul.f32 %v578, %v577
          %v580 = vmul.f32 0.5, %v579
          %v581 = vsub.f32 1.5, %v580
          %v582 = vmul.f32 %v577, %v581
          %vm583 = vweird.f32 %v561
          %vm584 = vweird.f32 %v577
          %vm585 = vmor %vm583, %vm584
          %v586 = vsel %vm585, %v577, %v582
          %v587 = vrsqrt.pop %v562
          %v588 = vmul.f32 %v587, %v562
          %v589 = vmul.f32 %v588, %v587
          %v590 = vmul.f32 0.5, %v589
          %v591 = vsub.f32 1.5, %v590
          %v592 = vmul.f32 %v587, %v591
          %vm593 = vweird.f32 %v562
          %vm594 = vweird.f32 %v587
          %vm595 = vmor %vm593, %vm594
          %v596 = vsel %vm595, %v587, %v592
          %v597 = vrsqrt.pop %v563
          %v598 = vmul.f32 %v597, %v563
          %v599 = vmul.f32 %v598, %v597
          %v600 = vmul.f32 0.5, %v599
          %v601 = vsub.f32 1.5, %v600
          %v602 = vmul.f32 %v597, %v601
          %vm603 = vweird.f32 %v563
          %vm604 = vweird.f32 %v597
          %vm605 = vmor %vm603, %vm604
          %v606 = vsel %vm605, %v597, %v602
          %v607 = vrsqrt.pop %v564
          %v608 = vmul.f32 %v607, %v564
          %v609 = vmul.f32 %v608, %v607
          %v610 = vmul.f32 0.5, %v609
          %v611 = vsub.f32 1.5, %v610
          %v612 = vmul.f32 %v607, %v611
          %vm613 = vweird.f32 %v564
          %vm614 = vweird.f32 %v607
          %vm615 = vmor %vm613, %vm614
          %v616 = vsel %vm615, %v607, %v612
          %v617 = vrsqrt.pop %v565
          %v618 = vmul.f32 %v617, %v565
          %v619 = vmul.f32 %v618, %v617
          %v620 = vmul.f32 0.5, %v619
          %v621 = vsub.f32 1.5, %v620
          %v622 = vmul.f32 %v617, %v621
          %vm623 = vweird.f32 %v565
          %vm624 = vweird.f32 %v617
          %vm625 = vmor %vm623, %vm624
          %v626 = vsel %vm625, %v617, %v622
          %v627 = vrsqrt.pop %v566
          %v628 = vmul.f32 %v627, %v566
          %v629 = vmul.f32 %v628, %v627
          %v630 = vmul.f32 0.5, %v629
          %v631 = vsub.f32 1.5, %v630
          %v632 = vmul.f32 %v627, %v631
          %vm633 = vweird.f32 %v566
          %vm634 = vweird.f32 %v627
          %vm635 = vmor %vm633, %vm634
          %v636 = vsel %vm635, %v627, %v632
          %v637 = vrsqrt.pop %v567
          %v638 = vmul.f32 %v637, %v567
          %v639 = vmul.f32 %v638, %v637
          %v640 = vmul.f32 0.5, %v639
          %v641 = vsub.f32 1.5, %v640
          %v642 = vmul.f32 %v637, %v641
          %vm643 = vweird.f32 %v567
          %vm644 = vweird.f32 %v637
          %vm645 = vmor %vm643, %vm644
          %v646 = vsel %vm645, %v637, %v642
          %v647 = vrsqrt.pop %v568
          %v648 = vmul.f32 %v647, %v568
          %v649 = vmul.f32 %v648, %v647
          %v650 = vmul.f32 0.5, %v649
          %v651 = vsub.f32 1.5, %v650
          %v652 = vmul.f32 %v647, %v651
          %vm653 = vweird.f32 %v568
          %vm654 = vweird.f32 %v647
          %vm655 = vmor %vm653, %vm654
          %v656 = vsel %vm655, %v647, %v652
          %v657 = vrsqrt.pop %v569
          %v658 = vmul.f32 %v657, %v569
          %v659 = vmul.f32 %v658, %v657
          %v660 = vmul.f32 0.5, %v659
          %v661 = vsub.f32 1.5, %v660
          %v662 = vmul.f32 %v657, %v661
          %vm663 = vweird.f32 %v569
          %vm664 = vweird.f32 %v657
          %vm665 = vmor %vm663, %vm664
          %v666 = vsel %vm665, %v657, %v662
          %v667 = vrsqrt.pop %v570
          %v668 = vmul.f32 %v667, %v570
          %v669 = vmul.f32 %v668, %v667
          %v670 = vmul.f32 0.5, %v669
          %v671 = vsub.f32 1.5, %v670
          %v672 = vmul.f32 %v667, %v671
          %vm673 = vweird.f32 %v570
          %vm674 = vweird.f32 %v667
          %vm675 = vmor %vm673, %vm674
          %v676 = vsel %vm675, %v667, %v672
          %v677 = vrsqrt.pop %v571
          %v678 = vmul.f32 %v677, %v571
          %v679 = vmul.f32 %v678, %v677
          %v680 = vmul.f32 0.5, %v679
          %v681 = vsub.f32 1.5, %v680
          %v682 = vmul.f32 %v677, %v681
          %vm683 = vweird.f32 %v571
          %vm684 = vweird.f32 %v677
          %vm685 = vmor %vm683, %vm684
          %v686 = vsel %vm685, %v677, %v682
          %v687 = vrsqrt.pop %v572
          %v688 = vmul.f32 %v687, %v572
          %v689 = vmul.f32 %v688, %v687
          %v690 = vmul.f32 0.5, %v689
          %v691 = vsub.f32 1.5, %v690
          %v692 = vmul.f32 %v687, %v691
          %vm693 = vweird.f32 %v572
          %vm694 = vweird.f32 %v687
          %vm695 = vmor %vm693, %vm694
          %v696 = vsel %vm695, %v687, %v692
          %v697 = vrsqrt.pop %v573
          %v698 = vmul.f32 %v697, %v573
          %v699 = vmul.f32 %v698, %v697
          %v700 = vmul.f32 0.5, %v699
          %v701 = vsub.f32 1.5, %v700
          %v702 = vmul.f32 %v697, %v701
          %vm703 = vweird.f32 %v573
          %vm704 = vweird.f32 %v697
          %vm705 = vmor %vm703, %vm704
          %v706 = vsel %vm705, %v697, %v702
          %v707 = vrsqrt.pop %v574
          %v708 = vmul.f32 %v707, %v574
          %v709 = vmul.f32 %v708, %v707
          %v710 = vmul.f32 0.5, %v709
          %v711 = vsub.f32 1.5, %v710
          %v712 = vmul.f32 %v707, %v711
          %vm713 = vweird.f32 %v574
          %vm714 = vweird.f32 %v707
          %vm715 = vmor %vm713, %vm714
          %v716 = vsel %vm715, %v707, %v712
          %v717 = vrsqrt.pop %v575
          %v718 = vmul.f32 %v717, %v575
          %v719 = vmul.f32 %v718, %v717
          %v720 = vmul.f32 0.5, %v719
          %v721 = vsub.f32 1.5, %v720
          %v722 = vmul.f32 %v717, %v721
          %vm723 = vweird.f32 %v575
          %vm724 = vweird.f32 %v717
          %vm725 = vmor %vm723, %vm724
          %v726 = vsel %vm725, %v717, %v722
          %v727 = vrsqrt.pop %v576
          %v728 = vmul.f32 %v727, %v576
          %v729 = vmul.f32 %v728, %v727
          %v730 = vmul.f32 0.5, %v729
          %v731 = vsub.f32 1.5, %v730
          %v732 = vmul.f32 %v727, %v731
          %vm733 = vweird.f32 %v576
          %vm734 = vweird.f32 %v727
          %vm735 = vmor %vm733, %vm734
          %v736 = vsel %vm735, %v727, %v732
          %v737 = vmul.f32 %v481, %v586
          %v738 = vmul.f32 %v482, %v596
          %v739 = vmul.f32 %v483, %v606
          %v740 = vmul.f32 %v484, %v616
          %v741 = vmul.f32 %v485, %v626
          %v742 = vmul.f32 %v486, %v636
          %v743 = vmul.f32 %v487, %v646
          %v744 = vmul.f32 %v488, %v656
          %v745 = vmul.f32 %v489, %v666
          %v746 = vmul.f32 %v490, %v676
          %v747 = vmul.f32 %v491, %v686
          %v748 = vmul.f32 %v492, %v696
          %v749 = vmul.f32 %v493, %v706
          %v750 = vmul.f32 %v494, %v716
          %v751 = vmul.f32 %v495, %v726
          %v752 = vmul.f32 %v496, %v736
          %vm753 = vcmp.gt.f32.partialorder %v737, 0.0
          %vm754 = vcmp.gt.f32.partialorder %v738, 0.0
          %vm755 = vcmp.gt.f32.partialorder %v739, 0.0
          %vm756 = vcmp.gt.f32.partialorder %v740, 0.0
          %vm757 = vcmp.gt.f32.partialorder %v741, 0.0
          %vm758 = vcmp.gt.f32.partialorder %v742, 0.0
          %vm759 = vcmp.gt.f32.partialorder %v743, 0.0
          %vm760 = vcmp.gt.f32.partialorder %v744, 0.0
          %vm761 = vcmp.gt.f32.partialorder %v745, 0.0
          %vm762 = vcmp.gt.f32.partialorder %v746, 0.0
          %vm763 = vcmp.gt.f32.partialorder %v747, 0.0
          %vm764 = vcmp.gt.f32.partialorder %v748, 0.0
          %vm765 = vcmp.gt.f32.partialorder %v749, 0.0
          %vm766 = vcmp.gt.f32.partialorder %v750, 0.0
          %vm767 = vcmp.gt.f32.partialorder %v751, 0.0
          %vm768 = vcmp.gt.f32.partialorder %v752, 0.0
          %v769 = vmul.f32 %v737, 0.01
          %v770 = vmul.f32 %v738, 0.01
          %v771 = vmul.f32 %v739, 0.01
          %v772 = vmul.f32 %v740, 0.01
          %v773 = vmul.f32 %v741, 0.01
          %v774 = vmul.f32 %v742, 0.01
          %v775 = vmul.f32 %v743, 0.01
          %v776 = vmul.f32 %v744, 0.01
          %v777 = vmul.f32 %v745, 0.01
          %v778 = vmul.f32 %v746, 0.01
          %v779 = vmul.f32 %v747, 0.01
          %v780 = vmul.f32 %v748, 0.01
          %v781 = vmul.f32 %v749, 0.01
          %v782 = vmul.f32 %v750, 0.01
          %v783 = vmul.f32 %v751, 0.01
          %v784 = vmul.f32 %v752, 0.01
          %v785 = vsel %vm753, %v737, %v769
          %v786 = vsel %vm754, %v738, %v770
          %v787 = vsel %vm755, %v739, %v771
          %v788 = vsel %vm756, %v740, %v772
          %v789 = vsel %vm757, %v741, %v773
          %v790 = vsel %vm758, %v742, %v774
          %v791 = vsel %vm759, %v743, %v775
          %v792 = vsel %vm760, %v744, %v776
          %v793 = vsel %vm761, %v745, %v777
          %v794 = vsel %vm762, %v746, %v778
          %v795 = vsel %vm763, %v747, %v779
          %v796 = vsel %vm764, %v748, %v780
          %v797 = vsel %vm765, %v749, %v781
          %v798 = vsel %vm766, %v750, %v782
          %v799 = vsel %vm767, %v751, %v783
          %v800 = vsel %vm768, %v752, %v784
          %v801 = vpack.c.bf16 %v785, %v785
          %v802 = vpack.c.bf16 %v786, %v786
          %v803 = vpack.c.bf16 %v787, %v787
          %v804 = vpack.c.bf16 %v788, %v788
          %v805 = vpack.c.bf16 %v789, %v789
          %v806 = vpack.c.bf16 %v790, %v790
          %v807 = vpack.c.bf16 %v791, %v791
          %v808 = vpack.c.bf16 %v792, %v792
          %v809 = vpack.c.bf16 %v793, %v793
          %v810 = vpack.c.bf16 %v794, %v794
          %v811 = vpack.c.bf16 %v795, %v795
          %v812 = vpack.c.bf16 %v796, %v796
          %v813 = vpack.c.bf16 %v797, %v797
          %v814 = vpack.c.bf16 %v798, %v798
          %v815 = vpack.c.bf16 %v799, %v799
          %v816 = vpack.c.bf16 %v800, %v800
          %817 = vst [vmem:[#allocation2] sm:$0xf] %v801
          %818 = vst [vmem:[#allocation2 + $0x4] sm:$0xf] %v802
          %819 = vst [vmem:[#allocation2 + $0x8] sm:$0xf] %v803
          %820 = vst [vmem:[#allocation2 + $0xc] sm:$0xf] %v804
          %821 = vst [vmem:[#allocation2 + $0x10] sm:$0xf] %v805
          %822 = vst [vmem:[#allocation2 + $0x14] sm:$0xf] %v806
          %823 = vst [vmem:[#allocation2 + $0x18] sm:$0xf] %v807
          %824 = vst [vmem:[#allocation2 + $0x1c] sm:$0xf] %v808
          %825 = vst [vmem:[#allocation2 + $0x20] sm:$0xf] %v809
          %826 = vst [vmem:[#allocation2 + $0x24] sm:$0xf] %v810
          %827 = vst [vmem:[#allocation2 + $0x28] sm:$0xf] %v811
          %828 = vst [vmem:[#allocation2 + $0x2c] sm:$0xf] %v812
          %829 = vst [vmem:[#allocation2 + $0x30] sm:$0xf] %v813
          %830 = vst [vmem:[#allocation2 + $0x34] sm:$0xf] %v814
          %831 = vst [vmem:[#allocation2 + $0x38] sm:$0xf] %v815
          %832 = vst [vmem:[#allocation2 + $0x3c] sm:$0xf] %v816
        $region44: #{tpu_custom_call.1} parent=39 // pred_fallthru
          _
        %v833 = vld [vmem:[#allocation2] sm:$0xf]
        %v834 = vld [vmem:[#allocation2 + $0x4] sm:$0xf]
        %v835 = vld [vmem:[#allocation2 + $0x8] sm:$0xf]
        %v836 = vld [vmem:[#allocation2 + $0xc] sm:$0xf]
        %v837 = vld [vmem:[#allocation2 + $0x10] sm:$0xf]
        %v838 = vld [vmem:[#allocation2 + $0x14] sm:$0xf]
        %v839 = vld [vmem:[#allocation2 + $0x18] sm:$0xf]
        %v840 = vld [vmem:[#allocation2 + $0x1c] sm:$0xf]
        %v841 = vld [vmem:[#allocation2 + $0x20] sm:$0xf]
        %v842 = vld [vmem:[#allocation2 + $0x24] sm:$0xf]
        %v843 = vld [vmem:[#allocation2 + $0x28] sm:$0xf]
        %v844 = vld [vmem:[#allocation2 + $0x2c] sm:$0xf]
        %v845 = vld [vmem:[#allocation2 + $0x30] sm:$0xf]
        %v846 = vld [vmem:[#allocation2 + $0x34] sm:$0xf]
        %v847 = vld [vmem:[#allocation2 + $0x38] sm:$0xf]
        %v848 = vld [vmem:[#allocation2 + $0x3c] sm:$0xf]
        %v849 = vld [vmem:[%s266] sm:$0xf]
        %v850 = vld [vmem:[%s266 + $0x4] sm:$0xf]
        %v851 = vld [vmem:[%s266 + $0x8] sm:$0xf]
        %v852 = vld [vmem:[%s266 + $0xc] sm:$0xf]
        %v853 = vld [vmem:[%s266 + $0x10] sm:$0xf]
        %v854 = vld [vmem:[%s266 + $0x14] sm:$0xf]
        %v855 = vld [vmem:[%s266 + $0x18] sm:$0xf]
        %v856 = vld [vmem:[%s266 + $0x1c] sm:$0xf]
        %v857 = vld [vmem:[%s266 + $0x20] sm:$0xf]
        %v858 = vld [vmem:[%s266 + $0x24] sm:$0xf]
        %v859 = vld [vmem:[%s266 + $0x28] sm:$0xf]
        %v860 = vld [vmem:[%s266 + $0x2c] sm:$0xf]
        %v861 = vld [vmem:[%s266 + $0x30] sm:$0xf]
        %v862 = vld [vmem:[%s266 + $0x34] sm:$0xf]
        %v863 = vld [vmem:[%s266 + $0x38] sm:$0xf]
        %v864 = vld [vmem:[%s266 + $0x3c] sm:$0xf]
        %v865 = vld [vmem:[%s269] sm:$0x1]
        %v867 = vperm.slane %v865, 0
        %v885 = vunpack.c.l.b16 %v833
        %v886 = vunpack.c.l.b16 %v834
        %v887 = vunpack.c.l.b16 %v835
        %v888 = vunpack.c.l.b16 %v836
        %v889 = vunpack.c.l.b16 %v837
        %v890 = vunpack.c.l.b16 %v838
        %v891 = vunpack.c.l.b16 %v839
        %v892 = vunpack.c.l.b16 %v840
        %v893 = vunpack.c.l.b16 %v841
        %v894 = vunpack.c.l.b16 %v842
        %v895 = vunpack.c.l.b16 %v843
        %v896 = vunpack.c.l.b16 %v844
        %v897 = vunpack.c.l.b16 %v845
        %v898 = vunpack.c.l.b16 %v846
        %v899 = vunpack.c.l.b16 %v847
        %v900 = vunpack.c.l.b16 %v848
        %v901 = vpack.c.b16 %v886, %v885
        %v902 = vpack.c.b16 %v888, %v887
        %v903 = vpack.c.b16 %v890, %v889
        %v904 = vpack.c.b16 %v892, %v891
        %v905 = vpack.c.b16 %v894, %v893
        %v906 = vpack.c.b16 %v896, %v895
        %v907 = vpack.c.b16 %v898, %v897
        %v908 = vpack.c.b16 %v900, %v899
        %v933 = vunpack.c.l.b16 %v849
        %v934 = vunpack.c.l.b16 %v850
        %v935 = vunpack.c.l.b16 %v851
        %v936 = vunpack.c.l.b16 %v852
        %v937 = vunpack.c.l.b16 %v853
        %v938 = vunpack.c.l.b16 %v854
        %v939 = vunpack.c.l.b16 %v855
        %v940 = vunpack.c.l.b16 %v856
        %v941 = vunpack.c.l.b16 %v857
        %v942 = vunpack.c.l.b16 %v858
        %v943 = vunpack.c.l.b16 %v859
        %v944 = vunpack.c.l.b16 %v860
        %v945 = vunpack.c.l.b16 %v861
        %v946 = vunpack.c.l.b16 %v862
        %v947 = vunpack.c.l.b16 %v863
        %v948 = vunpack.c.l.b16 %v864
        %v949 = vpack.c.b16 %v934, %v933
        %v950 = vpack.c.b16 %v936, %v935
        %v951 = vpack.c.b16 %v938, %v937
        %v952 = vpack.c.b16 %v940, %v939
        %v953 = vpack.c.b16 %v942, %v941
        %v954 = vpack.c.b16 %v944, %v943
        %v955 = vpack.c.b16 %v946, %v945
        %v956 = vpack.c.b16 %v948, %v947
        %965 = vmatpush.bf16.msra.mxu0 %v956
        %966 = vmatpush.bf16.msra.mxu0 %v955
        %967 = vmatpush.bf16.msra.mxu0 %v954
        %968 = vmatpush.bf16.msra.mxu0 %v953
        %969 = vmatpush.bf16.msra.mxu0 %v952
        %970 = vmatpush.bf16.msra.mxu0 %v951
        %971 = vmatpush.bf16.msra.mxu0 %v950
        %972 = vmatpush.bf16.msra.mxu0 %v949
        %973 = vmatmul.bf16.gmra.mxu0 %v901
        %v974 = vpop.f32.mrf.mxu0
        %v975 = vadd.f32 %v867, %v974
        %v976 = vpop.f32.mrf.mxu0
        %v977 = vadd.f32 %v867, %v976
        %978 = vmatmul.bf16.gmra.mxu0 %v902
        %v979 = vpop.f32.mrf.mxu0
        %v980 = vadd.f32 %v867, %v979
        %v981 = vpop.f32.mrf.mxu0
        %v982 = vadd.f32 %v867, %v981
        %983 = vmatmul.bf16.gmra.mxu0 %v903
        %v984 = vpop.f32.mrf.mxu0
        %v985 = vadd.f32 %v867, %v984
        %v986 = vpop.f32.mrf.mxu0
        %v987 = vadd.f32 %v867, %v986
        %988 = vmatmul.bf16.gmra.mxu0 %v904
        %v989 = vpop.f32.mrf.mxu0
        %v990 = vadd.f32 %v867, %v989
        %v991 = vpop.f32.mrf.mxu0
        %v992 = vadd.f32 %v867, %v991
        %993 = vmatmul.bf16.gmra.mxu0 %v905
        %v994 = vpop.f32.mrf.mxu0
        %v995 = vadd.f32 %v867, %v994
        %v996 = vpop.f32.mrf.mxu0
        %v997 = vadd.f32 %v867, %v996
        %998 = vmatmul.bf16.gmra.mxu0 %v906
        %v999 = vpop.f32.mrf.mxu0
        %v1000 = vadd.f32 %v867, %v999
        %v1001 = vpop.f32.mrf.mxu0
        %v1002 = vadd.f32 %v867, %v1001
        %1003 = vmatmul.bf16.gmra.mxu0 %v907
        %v1004 = vpop.f32.mrf.mxu0
        %v1005 = vadd.f32 %v867, %v1004
        %v1006 = vpop.f32.mrf.mxu0
        %v1007 = vadd.f32 %v867, %v1006
        %1008 = vmatmul.bf16.gmra.mxu0 %v908
        %v1009 = vpop.f32.mrf.mxu0
        %v1010 = vadd.f32 %v867, %v1009
        %v1011 = vpop.f32.mrf.mxu0
        %v1012 = vadd.f32 %v867, %v1011
        %1013 = vdwg.mxu0
        %1014 = vst [vmem:[%s256] sm:$0xff] %v975
        %1015 = vst [vmem:[%s256 + $0x8] sm:$0xff] %v977
        %1016 = vst [vmem:[%s256 + $0x10] sm:$0xff] %v980
        %1017 = vst [vmem:[%s256 + $0x18] sm:$0xff] %v982
        %1018 = vst [vmem:[%s256 + $0x20] sm:$0xff] %v985
        %1019 = vst [vmem:[%s256 + $0x28] sm:$0xff] %v987
        %1020 = vst [vmem:[%s256 + $0x30] sm:$0xff] %v990
        %1021 = vst [vmem:[%s256 + $0x38] sm:$0xff] %v992
        %1022 = vst [vmem:[%s256 + $0x40] sm:$0xff] %v995
        %1023 = vst [vmem:[%s256 + $0x48] sm:$0xff] %v997
        %1024 = vst [vmem:[%s256 + $0x50] sm:$0xff] %v1000
        %1025 = vst [vmem:[%s256 + $0x58] sm:$0xff] %v1002
        %1026 = vst [vmem:[%s256 + $0x60] sm:$0xff] %v1005
        %1027 = vst [vmem:[%s256 + $0x68] sm:$0xff] %v1007
        %1028 = vst [vmem:[%s256 + $0x70] sm:$0xff] %v1010
        %1029 = vst [vmem:[%s256 + $0x78] sm:$0xff] %v1012
        %s1030 = sand.u32 %s161, 1
        %s1031 = scalar_lea.sflag [#allocation4], %s1030
        %s1032 = sand.u32 %s161, 1
        %s1033 = smul.addr %s1032, 128
        %s1034 = scalar_lea.vmem [#allocation3], %s1033
        // Predicated region
        $region45: #{tpu_custom_call.1} parent=39 // pred_check
          %p1035 = pneg %p171
        $region46: #{tpu_custom_call.1} parent=39 // pred_check_branch
          %1037 = sbr.rel (%p1035) target = $region48
        $region47: #{tpu_custom_call.1} parent=39 // pred_region
          %s1038 = smul.u32 16, %s23
          %1040 = vsyncadd %s1031, 0
          %s1041 = sadd.s32 %s24, %s1038
          %s1042 = smul.addr %s1041, 8
          %s1043 = scalar_lea.hbm %s5, %s1042
          %s1044 = sshll.u32 %s1034, 4
          %s1045 = int_to_ptr.vmem [resolvable:$true] %s1044
          %s1046 = sshll.u32 %s1043, 4
          %s1047 = int_to_ptr.hbm [resolvable:$true] %s1046
          %1052 = dma.vmem_to_hbm [thread:$0]  %s1045, 2048, %s1047, %s1031, 128, 128, 8
        $region48: #{tpu_custom_call.1} parent=39 // pred_fallthru
          _
      $region40: #{tpu_custom_call.1} parent=5 // pred_fallthru
        _
      %p1053 = scmp.le.s32.totalorder 2, %s14
      // Predicated region
      $region49: #{tpu_custom_call.1} parent=5 // pred_check
        %p1054 = pneg %p1053
      $region50: #{tpu_custom_call.1} parent=5 // pred_check_branch
        %1056 = sbr.rel (%p1054) target = $region52
      $region51: #{tpu_custom_call.1} parent=5 // pred_region
        %s1057 = ssub.s32 %s14, 2
        // Predicated region
        $region53: #{tpu_custom_call.1} parent=51 // pred_check
          %p1058 = pneg %p177
        $region54: #{tpu_custom_call.1} parent=51 // pred_check_branch
          %1060 = sbr.rel (%p1058) target = $region56
        $region55: #{tpu_custom_call.1} parent=51 // pred_region
          %s1061 = sand.u32 %s162, 1
          %s1062 = scalar_lea.sflag [#allocation4], %s1061
          %s1063 = sand.u32 %s162, 1
          %s1064 = smul.addr %s1063, 128
          %s1065 = scalar_lea.vmem [#allocation3], %s1064
          %1067 = dma.done %s1062, 2048
        $region56: #{tpu_custom_call.1} parent=51 // pred_fallthru
          _
      $region52: #{tpu_custom_call.1} parent=5 // pred_fallthru
        _
    $region6: #{tpu_custom_call.1} parent=1 // loop_footer
      %s18 = sadd.s32 1, %s14
    $region7: #{tpu_custom_call.1} parent=1 // loop_footer_branch
      %13 = sbr.rel target = $region3
    $region8: #{tpu_custom_call.1} parent=1 // loop_exit
      _
    %1068 = vsyncpa [#allocation4], 1
    %s1069 = scalar_lea.sflag [#allocation4], 1
    %1070 = vsyncpa %s1069, 1

</llo_original>
